<compile_context>
chip_gen: v6e
topology: v6e:2x2x1
jax: 0.10.0
libtpu: 0.0.40
codegen_flags: <defaults>
</compile_context>

<pallas_src>
import functools

import jax
import jax.numpy as jnp
from jax.experimental import pallas as pl
from jax.experimental.pallas import tpu as pltpu


def _round_up(n, m):
    return ((n + m - 1) // m) * m


def mlp_kernel(x_ref, w1_ref, b1_ref, w2_ref, b2_ref, w3_ref, b3_ref, o_ref):
    # Layer 1: (tb, in) @ (in, h1) + b1, ReLU
    h = jnp.dot(x_ref[...], w1_ref[...], preferred_element_type=jnp.float32)
    h = jnp.maximum(h + b1_ref[...], 0.0)
    # Layer 2: (tb, h1) @ (h1, h2) + b2, ReLU
    h = jnp.dot(h, w2_ref[...], preferred_element_type=jnp.float32)
    h = jnp.maximum(h + b2_ref[...], 0.0)
    # Output layer: (tb, h2) @ (h2, out) + b3, ReLU — natural width, masked
    # vst on the narrow lane dim is fine (HBM bytes are the wall, not vst slots).
    h = jnp.dot(h, w3_ref[...], preferred_element_type=jnp.float32)
    h = jnp.maximum(h + b3_ref[...], 0.0)
    o_ref[...] = h.astype(o_ref.dtype)


@functools.partial(jax.jit, static_argnames=("tile_b",))
def basic_ann_forward(x, params, tile_b=2048):
    """x: (B, in_features) f32. params: dict of pre-transposed weights/biases."""
    w1, b1, w2, b2, w3, b3 = (params["w1"], params["b1"], params["w2"],
                              params["b2"], params["w3"], params["b3"])
    B, in_f = x.shape
    out_dim = w3.shape[1]

    # Batch tile: cap at ~B/2 (so >=2 grid steps -> both v7x TensorCores work),
    # rounded to 8 sublanes. For small B, one full-array block (legal for any B).
    tb = min(int(tile_b), _round_up(pl.cdiv(B, 2), 8))
    tb = _round_up(max(tb, 1), 8)
    if tb >= B:
        tb = B  # block dims == full array dims; no divisibility requirement

    grid = (pl.cdiv(B, tb),)
    const = lambda shape: pl.BlockSpec(shape, lambda i: (0, 0))

    y = pl.pallas_call(
        mlp_kernel,
        out_shape=jax.ShapeDtypeStruct((B, out_dim), jnp.float32),
        grid=grid,
        in_specs=[
            pl.BlockSpec((tb, in_f), lambda i: (i, 0)),   # x tile, pipelined
            const(w1.shape), const(b1.shape),             # params: VMEM-resident
            const(w2.shape), const(b2.shape),
            const(w3.shape), const(b3.shape),
        ],
        out_specs=pl.BlockSpec((tb, out_dim), lambda i: (i, 0)),
        compiler_params=pltpu.CompilerParams(
            dimension_semantics=("parallel",)),
    )(x, w1, b1, w2, b2, w3, b3)

    return y


def init_params(key, in_features=4, h1=8, h2=9, out=3):
    """Deterministic init mimicking nn.Linear's U(-1/sqrt(fan_in), 1/sqrt(fan_in)).
    Weights stored pre-transposed as (fan_in, fan_out); biases as (1, fan_out)."""
    dims = [(in_features, h1), (h1, h2), (h2, out)]
    params = {}
    keys = jax.random.split(key, 2 * len(dims))
    for i, (fan_in, fan_out) in enumerate(dims):
        bound = 1.0 / jnp.sqrt(fan_in)
        params[f"w{i+1}"] = jax.random.uniform(
            keys[2 * i], (fan_in, fan_out), jnp.float32, -bound, bound)
        params[f"b{i+1}"] = jax.random.uniform(
            keys[2 * i + 1], (1, fan_out), jnp.float32, -bound, bound)
    return params


def reference_forward(x, params):
    h = jnp.maximum(x @ params["w1"] + params["b1"], 0.0)
    h = jnp.maximum(h @ params["w2"] + params["b2"], 0.0)
    h = jnp.maximum(h @ params["w3"] + params["b3"], 0.0)
    return h


if __name__ == "__main__":
    key = jax.random.PRNGKey(0)
    k_x, k_p = jax.random.split(key)

    batch, in_features, h1, h2, out = 64, 4, 8, 9, 3
    x = jax.random.normal(k_x, (batch, in_features), jnp.float32)
    params = init_params(k_p, in_features=in_features, h1=h1, h2=h2, out=out)

    # Default path: tile capped at B/2 -> 2-step grid (exercises pipelining).
    y = basic_ann_forward(x, params)
    jax.block_until_ready(y)
    y_ref = reference_forward(x, params)
    assert y.shape == (batch, out)
    assert jnp.allclose(y, y_ref, atol=1e-5, rtol=1e-5)

    # Non-multiple-of-8 batch, partial boundary block (no jnp.pad copy of x).
    batch2 = 40
    x2 = jax.random.normal(jax.random.PRNGKey(1), (batch2, in_features),
                           jnp.float32)
    y2 = basic_ann_forward(x2, params)
    jax.block_until_ready(y2)
    y2_ref = reference_forward(x2, params)
    assert y2.shape == (batch2, out)
    assert jnp.allclose(y2, y2_ref, atol=1e-5, rtol=1e-5)

    # Tiny batch: single full-array block path.
    batch3 = 2
    x3 = jax.random.normal(jax.random.PRNGKey(2), (batch3, in_features),
                           jnp.float32)
    y3 = basic_ann_forward(x3, params)
    jax.block_until_ready(y3)
    assert jnp.allclose(y3, reference_forward(x3, params), atol=1e-5, rtol=1e-5)

    print("KERNEL_OK")
</pallas_src>

<mosaic_0001>
module attributes {stable_mosaic.version = 11 : i64} {
  func.func @mlp_kernel(%arg0: i32, %arg1: memref<32x4xf32, #tpu.memory_space<vmem>>, %arg2: memref<4x8xf32, #tpu.memory_space<vmem>>, %arg3: memref<1x8xf32, #tpu.memory_space<vmem>>, %arg4: memref<8x9xf32, #tpu.memory_space<vmem>>, %arg5: memref<1x9xf32, #tpu.memory_space<vmem>>, %arg6: memref<9x3xf32, #tpu.memory_space<vmem>>, %arg7: memref<1x3xf32, #tpu.memory_space<vmem>>, %arg8: memref<32x3xf32, #tpu.memory_space<vmem>>) attributes {dimension_semantics = [#tpu.dimension_semantics<parallel>], iteration_bounds = array<i64: 2>, scalar_prefetch = 0 : i64, scratch_operands = 0 : i64, tpu.core_type = #tpu.core_type<tc>, window_params = [{transform_indices = @transform_0, window_bounds = array<i64: 32, 4>}, {pipeline_mode = #tpu.pipeline_mode<synchronous>, transform_indices = @transform_1, window_bounds = array<i64: 4, 8>}, {pipeline_mode = #tpu.pipeline_mode<synchronous>, transform_indices = @transform_2, window_bounds = array<i64: 1, 8>}, {pipeline_mode = #tpu.pipeline_mode<synchronous>, transform_indices = @transform_3, window_bounds = array<i64: 8, 9>}, {pipeline_mode = #tpu.pipeline_mode<synchronous>, transform_indices = @transform_4, window_bounds = array<i64: 1, 9>}, {pipeline_mode = #tpu.pipeline_mode<synchronous>, transform_indices = @transform_5, window_bounds = array<i64: 9, 3>}, {pipeline_mode = #tpu.pipeline_mode<synchronous>, transform_indices = @transform_6, window_bounds = array<i64: 1, 3>}, {transform_indices = @transform_7, window_bounds = array<i64: 32, 3>}]} {
    %c0 = arith.constant 0 : index
    %c0_0 = arith.constant 0 : index
    %0 = vector.load %arg1[%c0, %c0_0] : memref<32x4xf32, #tpu.memory_space<vmem>>, vector<32x4xf32>
    %c0_1 = arith.constant 0 : index
    %c0_2 = arith.constant 0 : index
    %1 = vector.load %arg2[%c0_1, %c0_2] : memref<4x8xf32, #tpu.memory_space<vmem>>, vector<4x8xf32>
    %cst = arith.constant dense<0.000000e+00> : vector<32x8xf32>
    %2 = tpu.matmul %0, %1, %cst {dimension_numbers = #tpu.dot_dimension_numbers<[1], [0], [0], [1], [0, 0, 1, 1], [], []>} : vector<32x4xf32>, vector<4x8xf32>, vector<32x8xf32> -> vector<32x8xf32>
    %c0_3 = arith.constant 0 : index
    %c0_4 = arith.constant 0 : index
    %3 = vector.load %arg3[%c0_3, %c0_4] : memref<1x8xf32, #tpu.memory_space<vmem>>, vector<1x8xf32>
    %4 = vector.broadcast %3 : vector<1x8xf32> to vector<32x8xf32>
    %5 = arith.addf %2, %4 : vector<32x8xf32>
    %cst_5 = arith.constant 0.000000e+00 : f32
    %6 = vector.broadcast %cst_5 : f32 to vector<32x8xf32>
    %7 = arith.maximumf %5, %6 : vector<32x8xf32>
    %c0_6 = arith.constant 0 : index
    %c0_7 = arith.constant 0 : index
    %8 = vector.load %arg4[%c0_6, %c0_7] : memref<8x9xf32, #tpu.memory_space<vmem>>, vector<8x9xf32>
    %cst_8 = arith.constant dense<0.000000e+00> : vector<32x9xf32>
    %9 = tpu.matmul %7, %8, %cst_8 {dimension_numbers = #tpu.dot_dimension_numbers<[1], [0], [0], [1], [0, 0, 1, 1], [], []>} : vector<32x8xf32>, vector<8x9xf32>, vector<32x9xf32> -> vector<32x9xf32>
    %c0_9 = arith.constant 0 : index
    %c0_10 = arith.constant 0 : index
    %10 = vector.load %arg5[%c0_9, %c0_10] : memref<1x9xf32, #tpu.memory_space<vmem>>, vector<1x9xf32>
    %11 = vector.broadcast %10 : vector<1x9xf32> to vector<32x9xf32>
    %12 = arith.addf %9, %11 : vector<32x9xf32>
    %cst_11 = arith.constant 0.000000e+00 : f32
    %13 = vector.broadcast %cst_11 : f32 to vector<32x9xf32>
    %14 = arith.maximumf %12, %13 : vector<32x9xf32>
    %c0_12 = arith.constant 0 : index
    %c0_13 = arith.constant 0 : index
    %15 = vector.load %arg6[%c0_12, %c0_13] : memref<9x3xf32, #tpu.memory_space<vmem>>, vector<9x3xf32>
    %cst_14 = arith.constant dense<0.000000e+00> : vector<32x3xf32>
    %16 = tpu.matmul %14, %15, %cst_14 {dimension_numbers = #tpu.dot_dimension_numbers<[1], [0], [0], [1], [0, 0, 1, 1], [], []>} : vector<32x9xf32>, vector<9x3xf32>, vector<32x3xf32> -> vector<32x3xf32>
    %c0_15 = arith.constant 0 : index
    %c0_16 = arith.constant 0 : index
    %17 = vector.load %arg7[%c0_15, %c0_16] : memref<1x3xf32, #tpu.memory_space<vmem>>, vector<1x3xf32>
    %18 = vector.broadcast %17 : vector<1x3xf32> to vector<32x3xf32>
    %19 = arith.addf %16, %18 : vector<32x3xf32>
    %cst_17 = arith.constant 0.000000e+00 : f32
    %20 = vector.broadcast %cst_17 : f32 to vector<32x3xf32>
    %21 = arith.maximumf %19, %20 : vector<32x3xf32>
    %c0_18 = arith.constant 0 : index
    %c0_19 = arith.constant 0 : index
    %22 = vector.load %arg8[%c0_18, %c0_19] : memref<32x3xf32, #tpu.memory_space<vmem>>, vector<32x3xf32>
    tpu.vector_store %arg8[%c0_18, %c0_19], %21 {strides = array<i32>} : memref<32x3xf32, #tpu.memory_space<vmem>>, vector<32x3xf32>,
    return
  }
  func.func @transform_0(%arg0: i32) -> (i32, i32) {
    %c0_i32 = arith.constant 0 : i32
    %c0_i32_0 = arith.constant 0 : i32
    return %arg0, %c0_i32 : i32, i32
  }
  func.func @transform_1(%arg0: i32) -> (i32, i32) {
    %c0_i32 = arith.constant 0 : i32
    %c0_i32_0 = arith.constant 0 : i32
    %c0_i32_1 = arith.constant 0 : i32
    return %c0_i32, %c0_i32_0 : i32, i32
  }
  func.func @transform_2(%arg0: i32) -> (i32, i32) {
    %c0_i32 = arith.constant 0 : i32
    %c0_i32_0 = arith.constant 0 : i32
    %c0_i32_1 = arith.constant 0 : i32
    return %c0_i32, %c0_i32_0 : i32, i32
  }
  func.func @transform_3(%arg0: i32) -> (i32, i32) {
    %c0_i32 = arith.constant 0 : i32
    %c0_i32_0 = arith.constant 0 : i32
    %c0_i32_1 = arith.constant 0 : i32
    return %c0_i32, %c0_i32_0 : i32, i32
  }
  func.func @transform_4(%arg0: i32) -> (i32, i32) {
    %c0_i32 = arith.constant 0 : i32
    %c0_i32_0 = arith.constant 0 : i32
    %c0_i32_1 = arith.constant 0 : i32
    return %c0_i32, %c0_i32_0 : i32, i32
  }
  func.func @transform_5(%arg0: i32) -> (i32, i32) {
    %c0_i32 = arith.constant 0 : i32
    %c0_i32_0 = arith.constant 0 : i32
    %c0_i32_1 = arith.constant 0 : i32
    return %c0_i32, %c0_i32_0 : i32, i32
  }
  func.func @transform_6(%arg0: i32) -> (i32, i32) {
    %c0_i32 = arith.constant 0 : i32
    %c0_i32_0 = arith.constant 0 : i32
    %c0_i32_1 = arith.constant 0 : i32
    return %c0_i32, %c0_i32_0 : i32, i32
  }
  func.func @transform_7(%arg0: i32) -> (i32, i32) {
    %c0_i32 = arith.constant 0 : i32
    %c0_i32_0 = arith.constant 0 : i32
    return %arg0, %c0_i32 : i32, i32
  }
}

</mosaic_0001>

<llo_original>
// kernel: basic_ann_forward.1
$region0: #{basic_ann_forward.1}
  #allocation0 [shape = 'u32[]', space=smem, size = 0x4, offset = 0x4, fixed_abs, tag = 'smem constant byte address 0x4 - core index']
  #allocation1 [shape = 'u32[144,128]{1,0:T(1,128)}', space=vmem, size = 0x12000, scoped, tag = 'internal scratch']
  %s0 = inlined_call_operand.vmem [shape: f32[64,4], index: 0, kind: input, shape index: {}]
  %s1 = inlined_call_operand.vmem [shape: f32[4,8], index: 1, kind: input, shape index: {}]
  %s2 = inlined_call_operand.vmem [shape: f32[1,8], index: 2, kind: input, shape index: {}]
  %s3 = inlined_call_operand.vmem [shape: f32[8,9], index: 3, kind: input, shape index: {}]
  %s4 = inlined_call_operand.vmem [shape: f32[1,9], index: 4, kind: input, shape index: {}]
  %s5 = inlined_call_operand.vmem [shape: f32[9,3], index: 5, kind: input, shape index: {}]
  %s6 = inlined_call_operand.vmem [shape: f32[1,3], index: 6, kind: input, shape index: {}]
  %s7 = inlined_call_operand.vmem [shape: f32[64,3], index: 7, kind: output, shape index: {}]
  %s8 = sld [smem:[#allocation0]]
  $region61: #{basic_ann_forward.1} parent=0
    _
  %s10 = ssub.s32 1, %s8
  %s11 = scalar_select 0, %s10, %s8
  loop: start=0, step=1, limit=4
  $region2: #{basic_ann_forward.1} parent=0 // loop_pre_header
    _
  $region3: #{basic_ann_forward.1} parent=0 // loop_header
    %s13 = sphi 0, %s17
    %p14 = scmp.ge.s32.totalorder %s13, 4
    %s23 = sphi 0, %s25
    %s26 = sphi 0, %s23
    %s27 = sphi 0, %s26
    %s43 = sphi 0, %s27
    %s47 = sphi 0, %s47
    %s49 = sphi 0, %s47
    %s50 = sphi 0, %s49
    %s64 = sphi 0, %s50
    %s68 = sphi 0, %s68
    %s70 = sphi 0, %s68
    %s71 = sphi 0, %s70
    %s85 = sphi 0, %s71
    %s89 = sphi 0, %s89
    %s91 = sphi 0, %s89
    %s92 = sphi 0, %s91
    %s106 = sphi 0, %s92
    %s110 = sphi 0, %s110
    %s112 = sphi 0, %s110
    %s113 = sphi 0, %s112
    %s127 = sphi 0, %s113
    %s131 = sphi 0, %s131
    %s133 = sphi 0, %s131
    %s134 = sphi 0, %s133
    %s148 = sphi 0, %s134
    %s152 = sphi 0, %s152
    %s154 = sphi 0, %s152
    %s155 = sphi 0, %s154
    %s169 = sphi 0, %s155
    %s175 = sphi 0, %s177
    %s178 = sphi 0, %s175
    %s179 = sphi 0, %s178
    %s195 = sphi 0, %s179
  $region4: #{basic_ann_forward.1} parent=0 // loop_header_branch
    %16 = sbr.rel (%p14) target = $region8
  $region5: #{basic_ann_forward.1} parent=0 // loop_body
    %s18 = ssub.s32 %s13, 1
    %s19 = ssub.s32 %s13, 2
    %s20 = sadd.s32 %s13, 1
    %s21 = ssub.s32 %s13, %s20
    %p22 = scmp.eq.s32.totalorder %s21, 0
    %s24 = sadd.s32 %s23, 1
    %s25 = scalar_select %p22, %s23, %s24
    %p28 = pneg %p22
    %p29 = scmp.eq.s32.totalorder %s13, 1
    %p30 = por %p28, %p29
    %p31 = scmp.ne.s32.totalorder %s23, %s26
    %p32 = scmp.eq.s32.totalorder %s13, 0
    %p33 = por %p31, %p32
    %p34 = scmp.ne.s32.totalorder %s23, %s26
    %p35 = scmp.eq.s32.totalorder %s18, 1
    %p36 = por %p34, %p35
    %p37 = scmp.ne.s32.totalorder %s26, %s27
    %p38 = scmp.eq.s32.totalorder %s18, 0
    %p39 = por %p37, %p38
    %p40 = scmp.ne.s32.totalorder %s26, %s27
    %p41 = scmp.eq.s32.totalorder %s19, 1
    %p42 = por %p40, %p41
    %p44 = scmp.ne.s32.totalorder %s27, %s43
    %p45 = scmp.eq.s32.totalorder %s19, 0
    %p46 = por %p44, %p45
    %s48 = sadd.s32 %s47, 1
    %p51 = scmp.eq.s32.totalorder %s13, 1
    %p52 = scmp.ne.s32.totalorder %s47, %s49
    %p53 = scmp.eq.s32.totalorder %s13, 0
    %p54 = por %p52, %p53
    %p55 = scmp.ne.s32.totalorder %s47, %s49
    %p56 = scmp.eq.s32.totalorder %s18, 1
    %p57 = por %p55, %p56
    %p58 = scmp.ne.s32.totalorder %s49, %s50
    %p59 = scmp.eq.s32.totalorder %s18, 0
    %p60 = por %p58, %p59
    %p61 = scmp.ne.s32.totalorder %s49, %s50
    %p62 = scmp.eq.s32.totalorder %s19, 1
    %p63 = por %p61, %p62
    %p65 = scmp.ne.s32.totalorder %s50, %s64
    %p66 = scmp.eq.s32.totalorder %s19, 0
    %p67 = por %p65, %p66
    %s69 = sadd.s32 %s68, 1
    %p72 = scmp.eq.s32.totalorder %s13, 1
    %p73 = scmp.ne.s32.totalorder %s68, %s70
    %p74 = scmp.eq.s32.totalorder %s13, 0
    %p75 = por %p73, %p74
    %p76 = scmp.ne.s32.totalorder %s68, %s70
    %p77 = scmp.eq.s32.totalorder %s18, 1
    %p78 = por %p76, %p77
    %p79 = scmp.ne.s32.totalorder %s70, %s71
    %p80 = scmp.eq.s32.totalorder %s18, 0
    %p81 = por %p79, %p80
    %p82 = scmp.ne.s32.totalorder %s70, %s71
    %p83 = scmp.eq.s32.totalorder %s19, 1
    %p84 = por %p82, %p83
    %p86 = scmp.ne.s32.totalorder %s71, %s85
    %p87 = scmp.eq.s32.totalorder %s19, 0
    %p88 = por %p86, %p87
    %s90 = sadd.s32 %s89, 1
    %p93 = scmp.eq.s32.totalorder %s13, 1
    %p94 = scmp.ne.s32.totalorder %s89, %s91
    %p95 = scmp.eq.s32.totalorder %s13, 0
    %p96 = por %p94, %p95
    %p97 = scmp.ne.s32.totalorder %s89, %s91
    %p98 = scmp.eq.s32.totalorder %s18, 1
    %p99 = por %p97, %p98
    %p100 = scmp.ne.s32.totalorder %s91, %s92
    %p101 = scmp.eq.s32.totalorder %s18, 0
    %p102 = por %p100, %p101
    %p103 = scmp.ne.s32.totalorder %s91, %s92
    %p104 = scmp.eq.s32.totalorder %s19, 1
    %p105 = por %p103, %p104
    %p107 = scmp.ne.s32.totalorder %s92, %s106
    %p108 = scmp.eq.s32.totalorder %s19, 0
    %p109 = por %p107, %p108
    %s111 = sadd.s32 %s110, 1
    %p114 = scmp.eq.s32.totalorder %s13, 1
    %p115 = scmp.ne.s32.totalorder %s110, %s112
    %p116 = scmp.eq.s32.totalorder %s13, 0
    %p117 = por %p115, %p116
    %p118 = scmp.ne.s32.totalorder %s110, %s112
    %p119 = scmp.eq.s32.totalorder %s18, 1
    %p120 = por %p118, %p119
    %p121 = scmp.ne.s32.totalorder %s112, %s113
    %p122 = scmp.eq.s32.totalorder %s18, 0
    %p123 = por %p121, %p122
    %p124 = scmp.ne.s32.totalorder %s112, %s113
    %p125 = scmp.eq.s32.totalorder %s19, 1
    %p126 = por %p124, %p125
    %p128 = scmp.ne.s32.totalorder %s113, %s127
    %p129 = scmp.eq.s32.totalorder %s19, 0
    %p130 = por %p128, %p129
    %s132 = sadd.s32 %s131, 1
    %p135 = scmp.eq.s32.totalorder %s13, 1
    %p136 = scmp.ne.s32.totalorder %s131, %s133
    %p137 = scmp.eq.s32.totalorder %s13, 0
    %p138 = por %p136, %p137
    %p139 = scmp.ne.s32.totalorder %s131, %s133
    %p140 = scmp.eq.s32.totalorder %s18, 1
    %p141 = por %p139, %p140
    %p142 = scmp.ne.s32.totalorder %s133, %s134
    %p143 = scmp.eq.s32.totalorder %s18, 0
    %p144 = por %p142, %p143
    %p145 = scmp.ne.s32.totalorder %s133, %s134
    %p146 = scmp.eq.s32.totalorder %s19, 1
    %p147 = por %p145, %p146
    %p149 = scmp.ne.s32.totalorder %s134, %s148
    %p150 = scmp.eq.s32.totalorder %s19, 0
    %p151 = por %p149, %p150
    %s153 = sadd.s32 %s152, 1
    %p156 = scmp.eq.s32.totalorder %s13, 1
    %p157 = scmp.ne.s32.totalorder %s152, %s154
    %p158 = scmp.eq.s32.totalorder %s13, 0
    %p159 = por %p157, %p158
    %p160 = scmp.ne.s32.totalorder %s152, %s154
    %p161 = scmp.eq.s32.totalorder %s18, 1
    %p162 = por %p160, %p161
    %p163 = scmp.ne.s32.totalorder %s154, %s155
    %p164 = scmp.eq.s32.totalorder %s18, 0
    %p165 = por %p163, %p164
    %p166 = scmp.ne.s32.totalorder %s154, %s155
    %p167 = scmp.eq.s32.totalorder %s19, 1
    %p168 = por %p166, %p167
    %p170 = scmp.ne.s32.totalorder %s155, %s169
    %p171 = scmp.eq.s32.totalorder %s19, 0
    %p172 = por %p170, %p171
    %s173 = ssub.s32 %s13, %s20
    %p174 = scmp.eq.s32.totalorder %s173, 0
    %s176 = sadd.s32 %s175, 1
    %s177 = scalar_select %p174, %s175, %s176
    %p180 = pneg %p174
    %p181 = scmp.eq.s32.totalorder %s13, 1
    %p182 = por %p180, %p181
    %p183 = scmp.ne.s32.totalorder %s175, %s178
    %p184 = scmp.eq.s32.totalorder %s13, 0
    %p185 = por %p183, %p184
    %p186 = scmp.ne.s32.totalorder %s175, %s178
    %p187 = scmp.eq.s32.totalorder %s18, 1
    %p188 = por %p186, %p187
    %p189 = scmp.ne.s32.totalorder %s178, %s179
    %p190 = scmp.eq.s32.totalorder %s18, 0
    %p191 = por %p189, %p190
    %p192 = scmp.ne.s32.totalorder %s178, %s179
    %p193 = scmp.eq.s32.totalorder %s19, 1
    %p194 = por %p192, %p193
    %p196 = scmp.ne.s32.totalorder %s179, %s195
    %p197 = scmp.eq.s32.totalorder %s19, 0
    %p198 = por %p196, %p197
    %p199 = scmp.le.s32.totalorder 1, %s13
    %p200 = scmp.lt.s32.totalorder %s13, 3
    %p201 = pnand %p199, %p200
    %p202 = pneg %p201
    // Predicated region
    $region9: #{basic_ann_forward.1} parent=5 // pred_check
      _
    $region10: #{basic_ann_forward.1} parent=5 // pred_check_branch
      %204 = sbr.rel (%p201) target = $region12
    $region11: #{basic_ann_forward.1} parent=5 // pred_region
      %s205 = ssub.s32 %s13, 1
      // Predicated region
      $region13: #{basic_ann_forward.1} parent=11 // pred_check
        %p206 = pneg %p60
      $region14: #{basic_ann_forward.1} parent=11 // pred_check_branch
        %208 = sbr.rel (%p206) target = $region16
      $region15: #{basic_ann_forward.1} parent=11 // pred_region
        _
      $region16: #{basic_ann_forward.1} parent=11 // pred_fallthru
        _
      // Predicated region
      $region17: #{basic_ann_forward.1} parent=11 // pred_check
        %p209 = pneg %p81
      $region18: #{basic_ann_forward.1} parent=11 // pred_check_branch
        %211 = sbr.rel (%p209) target = $region20
      $region19: #{basic_ann_forward.1} parent=11 // pred_region
        _
      $region20: #{basic_ann_forward.1} parent=11 // pred_fallthru
        _
      // Predicated region
      $region21: #{basic_ann_forward.1} parent=11 // pred_check
        %p212 = pneg %p102
      $region22: #{basic_ann_forward.1} parent=11 // pred_check_branch
        %214 = sbr.rel (%p212) target = $region24
      $region23: #{basic_ann_forward.1} parent=11 // pred_region
        _
      $region24: #{basic_ann_forward.1} parent=11 // pred_fallthru
        _
      // Predicated region
      $region25: #{basic_ann_forward.1} parent=11 // pred_check
        %p215 = pneg %p123
      $region26: #{basic_ann_forward.1} parent=11 // pred_check_branch
        %217 = sbr.rel (%p215) target = $region28
      $region27: #{basic_ann_forward.1} parent=11 // pred_region
        _
      $region28: #{basic_ann_forward.1} parent=11 // pred_fallthru
        _
      // Predicated region
      $region29: #{basic_ann_forward.1} parent=11 // pred_check
        %p218 = pneg %p144
      $region30: #{basic_ann_forward.1} parent=11 // pred_check_branch
        %220 = sbr.rel (%p218) target = $region32
      $region31: #{basic_ann_forward.1} parent=11 // pred_region
        _
      $region32: #{basic_ann_forward.1} parent=11 // pred_fallthru
        _
      // Predicated region
      $region33: #{basic_ann_forward.1} parent=11 // pred_check
        %p221 = pneg %p165
      $region34: #{basic_ann_forward.1} parent=11 // pred_check_branch
        %223 = sbr.rel (%p221) target = $region36
      $region35: #{basic_ann_forward.1} parent=11 // pred_region
        _
      $region36: #{basic_ann_forward.1} parent=11 // pred_fallthru
        _
    $region12: #{basic_ann_forward.1} parent=5 // pred_fallthru
      _
    %p224 = scmp.lt.s32.totalorder %s13, 2
    // Predicated region
    $region37: #{basic_ann_forward.1} parent=5 // pred_check
      %p225 = pneg %p224
    $region38: #{basic_ann_forward.1} parent=5 // pred_check_branch
      %227 = sbr.rel (%p225) target = $region40
    $region39: #{basic_ann_forward.1} parent=5 // pred_region
      // Predicated region
      $region41: #{basic_ann_forward.1} parent=39 // pred_check
        %p228 = pneg %p33
      $region42: #{basic_ann_forward.1} parent=39 // pred_check_branch
        %230 = sbr.rel (%p228) target = $region44
      $region43: #{basic_ann_forward.1} parent=39 // pred_region
        %s231 = smul.u32 4, %s13
        %p232 = scmp.lt.s32.totalorder %s231, 7
        %s233 = scalar_select %p232, %s231, 7
        %s234 = smul.addr %s233, 8
        %s235 = scalar_lea.vmem %s0, %s234
        %s236 = smul.u32 4, %s13
      $region44: #{basic_ann_forward.1} parent=39 // pred_fallthru
        _
    $region40: #{basic_ann_forward.1} parent=5 // pred_fallthru
      _
    %p237 = scmp.le.s32.totalorder 1, %s13
    %p238 = scmp.lt.s32.totalorder %s13, 3
    %p239 = pnand %p237, %p238
    %p240 = pneg %p239
    // Predicated region
    $region45: #{basic_ann_forward.1} parent=5 // pred_check
      _
    $region46: #{basic_ann_forward.1} parent=5 // pred_check_branch
      %242 = sbr.rel (%p239) target = $region48
    $region47: #{basic_ann_forward.1} parent=5 // pred_region
      %s243 = ssub.s32 %s13, 1
      %s244 = smul.u32 4, %s18
      %p245 = scmp.lt.s32.totalorder %s244, 7
      %s246 = scalar_select %p245, %s244, 7
      %s247 = smul.addr %s246, 8
      %s248 = scalar_lea.vmem %s0, %s247
      %p249 = pneg %p39
      %p250 = pneg %p36
      %p251 = pneg %p60
      %p252 = pneg %p57
      %p253 = pneg %p81
      %p254 = pneg %p78
      %p255 = pneg %p102
      %p256 = pneg %p99
      %p257 = pneg %p123
      %p258 = pneg %p120
      %p259 = pneg %p144
      %p260 = pneg %p141
      %p261 = pneg %p165
      %p262 = pneg %p162
      %p263 = pneg %p191
      %p264 = pneg %p188
      %s265 = smul.u32 4, %s18
      %p266 = scmp.lt.s32.totalorder %s265, 7
      %s267 = scalar_select %p266, %s265, 7
      %s268 = smul.addr %s267, 8
      %s269 = scalar_lea.vmem %s7, %s268
      %s270 = smul.u32 4, %s18
      %p271 = scmp.lt.s32.totalorder %s270, 7
      %s272 = scalar_select %p271, %s270, 7
      %s273 = smul.addr %s272, 8
      %s274 = scalar_lea.vmem %s0, %s273
      %s275 = smul.u32 4, %s18
      %s276 = smul.u32 4, %s18
      %p277 = scmp.lt.s32.totalorder %s276, 7
      %s278 = scalar_select %p277, %s276, 7
      %s279 = smul.addr %s278, 8
      %s280 = scalar_lea.vmem %s7, %s279
      %s281 = smul.u32 4, %s18
      %v282 = vld [vmem:[%s274] sm:$0xff]
      %v283 = vld [vmem:[%s274 + $0x8] sm:$0xff]
      %v284 = vld [vmem:[%s274 + $0x10] sm:$0xff]
      %v285 = vld [vmem:[%s274 + $0x18] sm:$0xff]
      %v286 = vld [vmem:[%s1] sm:$0xf]
      %v287 = vld [vmem:[%s2] sm:$0x1]
      %v289 = vlaneseq
      %v290 = vshrl.u32 %v289, 7
      %v291 = vsub.s32 0, %v290
      %v292 = vrot.slane %v287, %v291
      %vm294 = vcmask 31744
      %v296 = vsel %vm294, %v282, 0
      %v299 = vsel %vm294, %v283, 0
      %v302 = vsel %vm294, %v284, 0
      %v305 = vsel %vm294, %v285, 0
      %vm307 = vcmask 1043456
      %v309 = vsel %vm307, %v286, 0
      %311 = vmatprep.subr.mxu0 0.0
      %312 = vmatpush1.msra.mxu0 0.0
      %313 = vmatprep.subr.mxu0 0.0
      %314 = vmatpush1.msra.mxu0 0.0
      %315 = vmatprep.subr.mxu0 0.0
      %316 = vmatpush1.msra.mxu0 0.0
      %317 = vmatprep.subr.mxu0 0.0
      %318 = vmatpush1.msra.mxu0 0.0
      %319 = vmatprep.subr.mxu0 0.0
      %320 = vmatpush1.msra.mxu0 0.0
      %321 = vmatprep.subr.mxu0 0.0
      %322 = vmatpush1.msra.mxu0 0.0
      %323 = vmatprep.subr.mxu0 0.0
      %324 = vmatpush1.msra.mxu0 0.0
      %325 = vmatprep.subr.mxu0 0.0
      %326 = vmatpush1.msra.mxu0 0.0
      %327 = vmatprep.subr.mxu0 0.0
      %328 = vmatpush1.msra.mxu0 0.0
      %329 = vmatprep.subr.mxu0 0.0
      %330 = vmatpush1.msra.mxu0 0.0
      %331 = vmatprep.subr.mxu0 0.0
      %332 = vmatpush1.msra.mxu0 0.0
      %333 = vmatprep.subr.mxu0 0.0
      %334 = vmatpush1.msra.mxu0 0.0
      %335 = vmatprep.subr.mxu0 0.0
      %336 = vmatpush1.msra.mxu0 0.0
      %337 = vmatprep.subr.mxu0 0.0
      %338 = vmatpush1.msra.mxu0 0.0
      %339 = vmatprep.subr.mxu0 0.0
      %340 = vmatpush1.msra.mxu0 0.0
      %341 = vmatprep.subr.mxu0 0.0
      %342 = vmatpush1.msra.mxu0 %v309
      %343 = vmatprep.subr.mxu0 0.0
      %344 = vmatpush2.msra.mxu0 0.0
      %345 = vmatprep.subr.mxu0 0.0
      %346 = vmatpush2.msra.mxu0 0.0
      %347 = vmatprep.subr.mxu0 0.0
      %348 = vmatpush2.msra.mxu0 0.0
      %349 = vmatprep.subr.mxu0 0.0
      %350 = vmatpush2.msra.mxu0 0.0
      %351 = vmatprep.subr.mxu0 0.0
      %352 = vmatpush2.msra.mxu0 0.0
      %353 = vmatprep.subr.mxu0 0.0
      %354 = vmatpush2.msra.mxu0 0.0
      %355 = vmatprep.subr.mxu0 0.0
      %356 = vmatpush2.msra.mxu0 0.0
      %357 = vmatprep.subr.mxu0 0.0
      %358 = vmatpush2.msra.mxu0 0.0
      %359 = vmatprep.subr.mxu0 0.0
      %360 = vmatpush2.msra.mxu0 0.0
      %361 = vmatprep.subr.mxu0 0.0
      %362 = vmatpush2.msra.mxu0 0.0
      %363 = vmatprep.subr.mxu0 0.0
      %364 = vmatpush2.msra.mxu0 0.0
      %365 = vmatprep.subr.mxu0 0.0
      %366 = vmatpush2.msra.mxu0 0.0
      %367 = vmatprep.subr.mxu0 0.0
      %368 = vmatpush2.msra.mxu0 0.0
      %369 = vmatprep.subr.mxu0 0.0
      %370 = vmatpush2.msra.mxu0 0.0
      %371 = vmatprep.subr.mxu0 0.0
      %372 = vmatpush2.msra.mxu0 0.0
      %373 = vmatprep.subr.mxu0 0.0
      %374 = vmatpush2.msra.mxu0 0.0
      %375 = vmatprep.mubr.f32.mxu0 0.0
      %376 = vmatmul.mubr.f32.gmra.mxu0 %v296
      %v377 = vpop.f32.mrf.mxu0
      %v378 = vadd.f32 %v292, %v377
      %v379 = vpop.f32.mrf.mxu0
      %380 = vmatprep.mubr.f32.mxu0 0.0
      %381 = vmatmul.mubr.f32.gmra.mxu0 %v299
      %v382 = vpop.f32.mrf.mxu0
      %v383 = vadd.f32 %v292, %v382
      %v384 = vpop.f32.mrf.mxu0
      %385 = vmatprep.mubr.f32.mxu0 0.0
      %386 = vmatmul.mubr.f32.gmra.mxu0 %v302
      %v387 = vpop.f32.mrf.mxu0
      %v388 = vadd.f32 %v292, %v387
      %v389 = vpop.f32.mrf.mxu0
      %390 = vmatprep.mubr.f32.mxu0 0.0
      %391 = vmatmul.mubr.f32.gmra.mxu0 %v305
      %v392 = vpop.f32.mrf.mxu0
      %v393 = vadd.f32 %v292, %v392
      %v394 = vpop.f32.mrf.mxu0
      %395 = vdwg.mxu0
      %v396 = vmax.f32 %v378, 0.0
      %v397 = vmax.f32 %v383, 0.0
      %v398 = vmax.f32 %v388, 0.0
      %v399 = vmax.f32 %v393, 0.0
      %v400 = vld [vmem:[%s3] sm:$0xff]
      %v401 = vld [vmem:[%s4] sm:$0x1]
      %v403 = vlaneseq
      %v404 = vshrl.u32 %v403, 7
      %v405 = vsub.s32 0, %v404
      %v406 = vrot.slane %v401, %v405
      %vm408 = vcmask 64512
      %v410 = vsel %vm408, %v396, 0
      %v413 = vsel %vm408, %v397, 0
      %v416 = vsel %vm408, %v398, 0
      %v419 = vsel %vm408, %v399, 0
      %421 = vmatprep.subr.mxu0 0.0
      %422 = vmatpush1.msra.mxu0 0.0
      %423 = vmatprep.subr.mxu0 0.0
      %424 = vmatpush1.msra.mxu0 0.0
      %425 = vmatprep.subr.mxu0 0.0
      %426 = vmatpush1.msra.mxu0 0.0
      %427 = vmatprep.subr.mxu0 0.0
      %428 = vmatpush1.msra.mxu0 0.0
      %429 = vmatprep.subr.mxu0 0.0
      %430 = vmatpush1.msra.mxu0 0.0
      %431 = vmatprep.subr.mxu0 0.0
      %432 = vmatpush1.msra.mxu0 0.0
      %433 = vmatprep.subr.mxu0 0.0
      %434 = vmatpush1.msra.mxu0 0.0
      %435 = vmatprep.subr.mxu0 0.0
      %436 = vmatpush1.msra.mxu0 0.0
      %437 = vmatprep.subr.mxu0 0.0
      %438 = vmatpush1.msra.mxu0 0.0
      %439 = vmatprep.subr.mxu0 0.0
      %440 = vmatpush1.msra.mxu0 0.0
      %441 = vmatprep.subr.mxu0 0.0
      %442 = vmatpush1.msra.mxu0 0.0
      %443 = vmatprep.subr.mxu0 0.0
      %444 = vmatpush1.msra.mxu0 0.0
      %445 = vmatprep.subr.mxu0 0.0
      %446 = vmatpush1.msra.mxu0 0.0
      %447 = vmatprep.subr.mxu0 0.0
      %448 = vmatpush1.msra.mxu0 0.0
      %449 = vmatprep.subr.mxu0 0.0
      %450 = vmatpush1.msra.mxu0 0.0
      %451 = vmatprep.subr.mxu0 0.0
      %452 = vmatpush1.msra.mxu0 %v400
      %453 = vmatprep.subr.mxu0 0.0
      %454 = vmatpush2.msra.mxu0 0.0
      %455 = vmatprep.subr.mxu0 0.0
      %456 = vmatpush2.msra.mxu0 0.0
      %457 = vmatprep.subr.mxu0 0.0
      %458 = vmatpush2.msra.mxu0 0.0
      %459 = vmatprep.subr.mxu0 0.0
      %460 = vmatpush2.msra.mxu0 0.0
      %461 = vmatprep.subr.mxu0 0.0
      %462 = vmatpush2.msra.mxu0 0.0
      %463 = vmatprep.subr.mxu0 0.0
      %464 = vmatpush2.msra.mxu0 0.0
      %465 = vmatprep.subr.mxu0 0.0
      %466 = vmatpush2.msra.mxu0 0.0
      %467 = vmatprep.subr.mxu0 0.0
      %468 = vmatpush2.msra.mxu0 0.0
      %469 = vmatprep.subr.mxu0 0.0
      %470 = vmatpush2.msra.mxu0 0.0
      %471 = vmatprep.subr.mxu0 0.0
      %472 = vmatpush2.msra.mxu0 0.0
      %473 = vmatprep.subr.mxu0 0.0
      %474 = vmatpush2.msra.mxu0 0.0
      %475 = vmatprep.subr.mxu0 0.0
      %476 = vmatpush2.msra.mxu0 0.0
      %477 = vmatprep.subr.mxu0 0.0
      %478 = vmatpush2.msra.mxu0 0.0
      %479 = vmatprep.subr.mxu0 0.0
      %480 = vmatpush2.msra.mxu0 0.0
      %481 = vmatprep.subr.mxu0 0.0
      %482 = vmatpush2.msra.mxu0 0.0
      %483 = vmatprep.subr.mxu0 0.0
      %484 = vmatpush2.msra.mxu0 0.0
      %485 = vmatprep.mubr.f32.mxu0 0.0
      %486 = vmatmul.mubr.f32.gmra.mxu0 %v410
      %v487 = vpop.f32.mrf.mxu0
      %v488 = vadd.f32 %v406, %v487
      %v489 = vpop.f32.mrf.mxu0
      %490 = vmatprep.mubr.f32.mxu0 0.0
      %491 = vmatmul.mubr.f32.gmra.mxu0 %v413
      %v492 = vpop.f32.mrf.mxu0
      %v493 = vadd.f32 %v406, %v492
      %v494 = vpop.f32.mrf.mxu0
      %495 = vmatprep.mubr.f32.mxu0 0.0
      %496 = vmatmul.mubr.f32.gmra.mxu0 %v416
      %v497 = vpop.f32.mrf.mxu0
      %v498 = vadd.f32 %v406, %v497
      %v499 = vpop.f32.mrf.mxu0
      %500 = vmatprep.mubr.f32.mxu0 0.0
      %501 = vmatmul.mubr.f32.gmra.mxu0 %v419
      %v502 = vpop.f32.mrf.mxu0
      %v503 = vadd.f32 %v406, %v502
      %v504 = vpop.f32.mrf.mxu0
      %505 = vdwg.mxu0
      %v506 = vmax.f32 %v488, 0.0
      %v507 = vmax.f32 %v493, 0.0
      %v508 = vmax.f32 %v498, 0.0
      %v509 = vmax.f32 %v503, 0.0
      %v510 = vld [vmem:[%s5] sm:$0xff]
      %v511 = vld [vmem:[%s5 + $0x8] sm:$0x1]
      %v512 = vld [vmem:[%s6] sm:$0x1]
      %v514 = vlaneseq
      %v515 = vshrl.u32 %v514, 7
      %v516 = vsub.s32 0, %v515
      %v517 = vrot.slane %v512, %v516
      %vm519 = vcmask 72704
      %v521 = vsel %vm519, %v506, 0
      %v524 = vsel %vm519, %v507, 0
      %v527 = vsel %vm519, %v508, 0
      %v530 = vsel %vm519, %v509, 0
      %vm532 = vcmask 1040384
      %v534 = vsel %vm532, %v511, 0
      %536 = vmatprep.subr.mxu0 0.0
      %537 = vmatpush1.msra.mxu0 0.0
      %538 = vmatprep.subr.mxu0 0.0
      %539 = vmatpush1.msra.mxu0 0.0
      %540 = vmatprep.subr.mxu0 0.0
      %541 = vmatpush1.msra.mxu0 0.0
      %542 = vmatprep.subr.mxu0 0.0
      %543 = vmatpush1.msra.mxu0 0.0
      %544 = vmatprep.subr.mxu0 0.0
      %545 = vmatpush1.msra.mxu0 0.0
      %546 = vmatprep.subr.mxu0 0.0
      %547 = vmatpush1.msra.mxu0 0.0
      %548 = vmatprep.subr.mxu0 0.0
      %549 = vmatpush1.msra.mxu0 0.0
      %550 = vmatprep.subr.mxu0 0.0
      %551 = vmatpush1.msra.mxu0 0.0
      %552 = vmatprep.subr.mxu0 0.0
      %553 = vmatpush1.msra.mxu0 0.0
      %554 = vmatprep.subr.mxu0 0.0
      %555 = vmatpush1.msra.mxu0 0.0
      %556 = vmatprep.subr.mxu0 0.0
      %557 = vmatpush1.msra.mxu0 0.0
      %558 = vmatprep.subr.mxu0 0.0
      %559 = vmatpush1.msra.mxu0 0.0
      %560 = vmatprep.subr.mxu0 0.0
      %561 = vmatpush1.msra.mxu0 0.0
      %562 = vmatprep.subr.mxu0 0.0
      %563 = vmatpush1.msra.mxu0 0.0
      %564 = vmatprep.subr.mxu0 0.0
      %565 = vmatpush1.msra.mxu0 %v534
      %566 = vmatprep.subr.mxu0 0.0
      %567 = vmatpush1.msra.mxu0 %v510
      %568 = vmatprep.subr.mxu0 0.0
      %569 = vmatpush2.msra.mxu0 0.0
      %570 = vmatprep.subr.mxu0 0.0
      %571 = vmatpush2.msra.mxu0 0.0
      %572 = vmatprep.subr.mxu0 0.0
      %573 = vmatpush2.msra.mxu0 0.0
      %574 = vmatprep.subr.mxu0 0.0
      %575 = vmatpush2.msra.mxu0 0.0
      %576 = vmatprep.subr.mxu0 0.0
      %577 = vmatpush2.msra.mxu0 0.0
      %578 = vmatprep.subr.mxu0 0.0
      %579 = vmatpush2.msra.mxu0 0.0
      %580 = vmatprep.subr.mxu0 0.0
      %581 = vmatpush2.msra.mxu0 0.0
      %582 = vmatprep.subr.mxu0 0.0
      %583 = vmatpush2.msra.mxu0 0.0
      %584 = vmatprep.subr.mxu0 0.0
      %585 = vmatpush2.msra.mxu0 0.0
      %586 = vmatprep.subr.mxu0 0.0
      %587 = vmatpush2.msra.mxu0 0.0
      %588 = vmatprep.subr.mxu0 0.0
      %589 = vmatpush2.msra.mxu0 0.0
      %590 = vmatprep.subr.mxu0 0.0
      %591 = vmatpush2.msra.mxu0 0.0
      %592 = vmatprep.subr.mxu0 0.0
      %593 = vmatpush2.msra.mxu0 0.0
      %594 = vmatprep.subr.mxu0 0.0
      %595 = vmatpush2.msra.mxu0 0.0
      %596 = vmatprep.subr.mxu0 0.0
      %597 = vmatpush2.msra.mxu0 0.0
      %598 = vmatprep.subr.mxu0 0.0
      %599 = vmatpush2.msra.mxu0 0.0
      %600 = vmatprep.mubr.f32.mxu0 0.0
      %601 = vmatmul.mubr.f32.gmra.mxu0 %v521
      %v602 = vpop.f32.mrf.mxu0
      %v603 = vadd.f32 %v517, %v602
      %v604 = vpop.f32.mrf.mxu0
      %605 = vmatprep.mubr.f32.mxu0 0.0
      %606 = vmatmul.mubr.f32.gmra.mxu0 %v524
      %v607 = vpop.f32.mrf.mxu0
      %v608 = vadd.f32 %v517, %v607
      %v609 = vpop.f32.mrf.mxu0
      %610 = vmatprep.mubr.f32.mxu0 0.0
      %611 = vmatmul.mubr.f32.gmra.mxu0 %v527
      %v612 = vpop.f32.mrf.mxu0
      %v613 = vadd.f32 %v517, %v612
      %v614 = vpop.f32.mrf.mxu0
      %615 = vmatprep.mubr.f32.mxu0 0.0
      %616 = vmatmul.mubr.f32.gmra.mxu0 %v530
      %v617 = vpop.f32.mrf.mxu0
      %v618 = vadd.f32 %v517, %v617
      %v619 = vpop.f32.mrf.mxu0
      %620 = vdwg.mxu0
      %v621 = vmax.f32 %v603, 0.0
      %v622 = vmax.f32 %v608, 0.0
      %v623 = vmax.f32 %v613, 0.0
      %v624 = vmax.f32 %v618, 0.0
      %vm625 = vcmask 23552
      %626 = vst.msk [vmem:[%s280] sm:$0xff] %vm625, %v621
      %627 = vst.msk [vmem:[%s280 + $0x8] sm:$0xff] %vm625, %v622
      %628 = vst.msk [vmem:[%s280 + $0x10] sm:$0xff] %vm625, %v623
      %629 = vst.msk [vmem:[%s280 + $0x18] sm:$0xff] %vm625, %v624
      %s630 = smul.u32 4, %s18
      %p631 = scmp.lt.s32.totalorder %s630, 7
      %s632 = scalar_select %p631, %s630, 7
      %s633 = smul.addr %s632, 8
      %s634 = scalar_lea.vmem %s7, %s633
      // Predicated region
      $region49: #{basic_ann_forward.1} parent=47 // pred_check
        %p635 = pneg %p188
      $region50: #{basic_ann_forward.1} parent=47 // pred_check_branch
        %637 = sbr.rel (%p635) target = $region52
      $region51: #{basic_ann_forward.1} parent=47 // pred_region
        %s638 = smul.u32 4, %s18
      $region52: #{basic_ann_forward.1} parent=47 // pred_fallthru
        _
    $region48: #{basic_ann_forward.1} parent=5 // pred_fallthru
      _
    %p639 = scmp.le.s32.totalorder 2, %s13
    // Predicated region
    $region53: #{basic_ann_forward.1} parent=5 // pred_check
      %p640 = pneg %p639
    $region54: #{basic_ann_forward.1} parent=5 // pred_check_branch
      %642 = sbr.rel (%p640) target = $region56
    $region55: #{basic_ann_forward.1} parent=5 // pred_region
      %s643 = ssub.s32 %s13, 2
      // Predicated region
      $region57: #{basic_ann_forward.1} parent=55 // pred_check
        %p644 = pneg %p194
      $region58: #{basic_ann_forward.1} parent=55 // pred_check_branch
        %646 = sbr.rel (%p644) target = $region60
      $region59: #{basic_ann_forward.1} parent=55 // pred_region
        %s647 = smul.u32 4, %s19
        %p648 = scmp.lt.s32.totalorder %s647, 7
        %s649 = scalar_select %p648, %s647, 7
        %s650 = smul.addr %s649, 8
        %s651 = scalar_lea.vmem %s7, %s650
      $region60: #{basic_ann_forward.1} parent=55 // pred_fallthru
        _
    $region56: #{basic_ann_forward.1} parent=5 // pred_fallthru
      _
  $region6: #{basic_ann_forward.1} parent=0 // loop_footer
    %s17 = sadd.s32 1, %s13
  $region7: #{basic_ann_forward.1} parent=0 // loop_footer_branch
    %12 = sbr.rel target = $region3
  $region8: #{basic_ann_forward.1} parent=0 // loop_exit
    _

</llo_original>
